<compile_context>
chip_gen: v7x
topology: tpu7x:2x2x1
jax: 0.10.0
libtpu: 0.0.40
codegen_flags: <defaults>
</compile_context>

<pallas_src>
import functools

import jax
import jax.numpy as jnp
from jax.experimental import pallas as pl
from jax.experimental.pallas import tpu as pltpu

IN_DIM = 784
HID_DIM = 128
OUT_DIM = 10
OUT_PAD = 128          # lane-dense output width
DEFAULT_TILE_B = 1024  # batch tile (amortizes per-step overhead; ~9 MiB VMEM)


def _round_up(a, m):
    return ((a + m - 1) // m) * m


def mlp_kernel(x_ref, w1_ref, b1_ref, w2_ref, b2_ref, o_ref):
    # Cast the streamed x tile to bf16 in-kernel (MXU-native); accumulate in f32.
    x = x_ref[...].astype(jnp.bfloat16)
    # fc1 + bias + ReLU (f32)
    h = jnp.dot(x, w1_ref[...], preferred_element_type=jnp.float32)
    h = jnp.maximum(h + b1_ref[...], 0.0)
    # fc2 + bias, lane-dense (tb, 128) store
    y = jnp.dot(h.astype(jnp.bfloat16), w2_ref[...],
                preferred_element_type=jnp.float32)
    o_ref[...] = (y + b2_ref[...]).astype(o_ref.dtype)


def pad_params(w1, b1, w2, b2):
    """Cast weights to bf16; zero-pad only the tiny output dim (10 -> 128).

    w1: (784,128) -> (784,128) bf16   (natural shape, no K padding)
    b1: (1,128)   -> (1,128)   f32
    w2: (128,10)  -> (128,128) bf16   (zero-padded columns)
    b2: (1,10)    -> (1,128)   f32    (zero-padded columns)
    """
    w1_p = w1.astype(jnp.bfloat16)
    b1_p = b1.astype(jnp.float32)
    w2_p = jnp.zeros((HID_DIM, OUT_PAD), jnp.bfloat16).at[:, :OUT_DIM].set(
        w2.astype(jnp.bfloat16))
    b2_p = jnp.zeros((1, OUT_PAD), jnp.float32).at[:, :OUT_DIM].set(
        b2.astype(jnp.float32))
    return w1_p, b1_p, w2_p, b2_p


@functools.partial(jax.jit, static_argnames=("tile_b",))
def classifier_forward(x, w1_p, b1_p, w2_p, b2_p, *, tile_b=DEFAULT_TILE_B):
    """relu(x @ W1 + b1) @ W2 + b2  for x of shape (B, 784), returns (B, 10) f32."""
    B = x.shape[0]

    # Tail-aware batch tiling: n_tiles * tb >= B with < 8 padded rows per tile.
    n_tiles = pl.cdiv(B, max(int(tile_b), 8))
    if B >= 16:
        # >= 2 grid steps so the "parallel" axis shards across v7x's 2 TCs.
        n_tiles = max(n_tiles, 2)
    tb = _round_up(pl.cdiv(B, n_tiles), 8)   # multiple of 8 (sublane constraint)
    b_pad = n_tiles * tb

    # Pad the batch only if needed (tail case); feature dim is NOT padded.
    x_p = x if b_pad == B else jnp.pad(x, ((0, b_pad - B), (0, 0)))

    x_bytes = IN_DIM * x_p.dtype.itemsize
    cost = pl.CostEstimate(
        flops=2 * b_pad * (IN_DIM * HID_DIM + HID_DIM * OUT_PAD),
        transcendentals=0,
        bytes_accessed=(b_pad * x_bytes                # x stream
                        + b_pad * OUT_PAD * 4          # output stream
                        + IN_DIM * HID_DIM * 2         # w1 (bf16)
                        + HID_DIM * OUT_PAD * 2        # w2 (bf16)
                        + (HID_DIM + OUT_PAD) * 4),    # biases
    )

    out_padded = pl.pallas_call(
        mlp_kernel,
        out_shape=jax.ShapeDtypeStruct((b_pad, OUT_PAD), jnp.float32),
        grid=(n_tiles,),
        in_specs=[
            pl.BlockSpec((tb, IN_DIM), lambda i: (i, 0)),        # x: streamed
            pl.BlockSpec((IN_DIM, HID_DIM), lambda i: (0, 0)),   # w1: resident
            pl.BlockSpec((1, HID_DIM), lambda i: (0, 0)),        # b1: resident
            pl.BlockSpec((HID_DIM, OUT_PAD), lambda i: (0, 0)),  # w2: resident
            pl.BlockSpec((1, OUT_PAD), lambda i: (0, 0)),        # b2: resident
        ],
        out_specs=pl.BlockSpec((tb, OUT_PAD), lambda i: (i, 0)),
        compiler_params=pltpu.CompilerParams(
            dimension_semantics=("parallel",),
            vmem_limit_bytes=32 * 1024 * 1024,
        ),
        cost_estimate=cost,
    )(x_p, w1_p, b1_p, w2_p, b2_p)

    # Drop batch + lane padding.  Padded batch rows contain relu(b1)@w2 + b2,
    # never reduce over out_padded before this slice.
    return out_padded[:B, :OUT_DIM]


def init_params(key):
    """Deterministic init mimicking nn.Linear default (uniform +/- 1/sqrt(fan_in)).

    Stored as (in, out) = transpose of PyTorch's (out, in).
    """
    k1, k2, k3, k4 = jax.random.split(key, 4)
    lim1 = 1.0 / jnp.sqrt(IN_DIM)
    lim2 = 1.0 / jnp.sqrt(HID_DIM)
    w1 = jax.random.uniform(k1, (IN_DIM, HID_DIM), jnp.float32, -lim1, lim1)
    b1 = jax.random.uniform(k2, (1, HID_DIM), jnp.float32, -lim1, lim1)
    w2 = jax.random.uniform(k3, (HID_DIM, OUT_DIM), jnp.float32, -lim2, lim2)
    b2 = jax.random.uniform(k4, (1, OUT_DIM), jnp.float32, -lim2, lim2)
    return w1, b1, w2, b2


if __name__ == "__main__":
    key = jax.random.PRNGKey(0)
    kx, kp = jax.random.split(key)

    B = 32  # small test batch
    x = jax.random.normal(kx, (B, IN_DIM), jnp.float32)
    w1, b1, w2, b2 = init_params(kp)
    w1_p, b1_p, w2_p, b2_p = pad_params(w1, b1, w2, b2)

    # With B=32 the wrapper forces a 2-step grid (tb=16), exercising the tiling.
    out = classifier_forward(x, w1_p, b1_p, w2_p, b2_p)
    jax.block_until_ready(out)
    assert out.shape == (B, OUT_DIM)

    # Matching-precision reference (bf16 matmul inputs, f32 accumulation).
    f32 = jnp.float32
    x_bf = x.astype(jnp.bfloat16).astype(f32)
    w1_bf = w1.astype(jnp.bfloat16).astype(f32)
    w2_bf = w2.astype(jnp.bfloat16).astype(f32)
    h_ref = jnp.maximum(x_bf @ w1_bf + b1, 0.0)
    y_ref = h_ref.astype(jnp.bfloat16).astype(f32) @ w2_bf + b2
    assert jnp.allclose(out, y_ref, atol=2e-2, rtol=2e-2)

    # Loose sanity check against the pure-f32 reference (module semantics).
    # TODO(synk): bf16 weights/activations deviate from the f32 PyTorch module;
    # acceptable for inference, flagged for bit-parity use cases.
    ref_f32 = jnp.maximum(x @ w1 + b1, 0.0) @ w2 + b2
    assert jnp.allclose(out, ref_f32, atol=5e-2, rtol=5e-2)

    # Also exercise an uneven / non-multiple-of-8 batch (tail padding path).
    x2 = jax.random.normal(kx, (13, IN_DIM), jnp.float32)
    out2 = classifier_forward(x2, w1_p, b1_p, w2_p, b2_p)
    jax.block_until_ready(out2)
    ref2 = jnp.maximum(x2 @ w1 + b1, 0.0) @ w2 + b2
    assert out2.shape == (13, OUT_DIM)
    assert jnp.allclose(out2, ref2, atol=5e-2, rtol=5e-2)

    print("KERNEL_OK")
</pallas_src>

<mosaic_0001>
module attributes {stable_mosaic.version = 11 : i64} {
  func.func @mlp_kernel(%arg0: i32, %arg1: memref<16x784xf32, #tpu.memory_space<vmem>>, %arg2: memref<784x128xbf16, #tpu.memory_space<vmem>>, %arg3: memref<1x128xf32, #tpu.memory_space<vmem>>, %arg4: memref<128x128xbf16, #tpu.memory_space<vmem>>, %arg5: memref<1x128xf32, #tpu.memory_space<vmem>>, %arg6: memref<16x128xf32, #tpu.memory_space<vmem>>) attributes {dimension_semantics = [#tpu.dimension_semantics<parallel>], iteration_bounds = array<i64: 2>, scalar_prefetch = 0 : i64, scratch_operands = 0 : i64, tpu.core_type = #tpu.core_type<tc>, window_params = [{transform_indices = @transform_0, window_bounds = array<i64: 16, 784>}, {pipeline_mode = #tpu.pipeline_mode<synchronous>, transform_indices = @transform_1, window_bounds = array<i64: 784, 128>}, {pipeline_mode = #tpu.pipeline_mode<synchronous>, transform_indices = @transform_2, window_bounds = array<i64: 1, 128>}, {pipeline_mode = #tpu.pipeline_mode<synchronous>, transform_indices = @transform_3, window_bounds = array<i64: 128, 128>}, {pipeline_mode = #tpu.pipeline_mode<synchronous>, transform_indices = @transform_4, window_bounds = array<i64: 1, 128>}, {transform_indices = @transform_5, window_bounds = array<i64: 16, 128>}]} {
    %c0 = arith.constant 0 : index
    %c0_0 = arith.constant 0 : index
    %0 = vector.load %arg1[%c0, %c0_0] : memref<16x784xf32, #tpu.memory_space<vmem>>, vector<16x784xf32>
    %1 = arith.truncf %0 : vector<16x784xf32> to vector<16x784xbf16>
    %c0_1 = arith.constant 0 : index
    %c0_2 = arith.constant 0 : index
    %2 = vector.load %arg2[%c0_1, %c0_2] : memref<784x128xbf16, #tpu.memory_space<vmem>>, vector<784x128xbf16>
    %cst = arith.constant dense<0.000000e+00> : vector<16x128xf32>
    %3 = tpu.matmul %1, %2, %cst {dimension_numbers = #tpu.dot_dimension_numbers<[1], [0], [0], [1], [0, 0, 1, 1], [], []>} : vector<16x784xbf16>, vector<784x128xbf16>, vector<16x128xf32> -> vector<16x128xf32>
    %c0_3 = arith.constant 0 : index
    %c0_4 = arith.constant 0 : index
    %4 = vector.load %arg3[%c0_3, %c0_4] : memref<1x128xf32, #tpu.memory_space<vmem>>, vector<1x128xf32>
    %5 = vector.broadcast %4 : vector<1x128xf32> to vector<16x128xf32>
    %6 = arith.addf %3, %5 : vector<16x128xf32>
    %cst_5 = arith.constant 0.000000e+00 : f32
    %7 = vector.broadcast %cst_5 : f32 to vector<16x128xf32>
    %8 = arith.maximumf %6, %7 : vector<16x128xf32>
    %9 = arith.truncf %8 : vector<16x128xf32> to vector<16x128xbf16>
    %c0_6 = arith.constant 0 : index
    %c0_7 = arith.constant 0 : index
    %10 = vector.load %arg4[%c0_6, %c0_7] : memref<128x128xbf16, #tpu.memory_space<vmem>>, vector<128x128xbf16>
    %cst_8 = arith.constant dense<0.000000e+00> : vector<16x128xf32>
    %11 = tpu.matmul %9, %10, %cst_8 {dimension_numbers = #tpu.dot_dimension_numbers<[1], [0], [0], [1], [0, 0, 1, 1], [], []>} : vector<16x128xbf16>, vector<128x128xbf16>, vector<16x128xf32> -> vector<16x128xf32>
    %c0_9 = arith.constant 0 : index
    %c0_10 = arith.constant 0 : index
    %12 = vector.load %arg5[%c0_9, %c0_10] : memref<1x128xf32, #tpu.memory_space<vmem>>, vector<1x128xf32>
    %13 = vector.broadcast %12 : vector<1x128xf32> to vector<16x128xf32>
    %14 = arith.addf %11, %13 : vector<16x128xf32>
    %c0_11 = arith.constant 0 : index
    %c0_12 = arith.constant 0 : index
    %15 = vector.load %arg6[%c0_11, %c0_12] : memref<16x128xf32, #tpu.memory_space<vmem>>, vector<16x128xf32>
    tpu.vector_store %arg6[%c0_11, %c0_12], %14 {strides = array<i32>} : memref<16x128xf32, #tpu.memory_space<vmem>>, vector<16x128xf32>,
    return
  }
  func.func @transform_0(%arg0: i32) -> (i32, i32) {
    %c0_i32 = arith.constant 0 : i32
    %c0_i32_0 = arith.constant 0 : i32
    return %arg0, %c0_i32 : i32, i32
  }
  func.func @transform_1(%arg0: i32) -> (i32, i32) {
    %c0_i32 = arith.constant 0 : i32
    %c0_i32_0 = arith.constant 0 : i32
    %c0_i32_1 = arith.constant 0 : i32
    return %c0_i32, %c0_i32_0 : i32, i32
  }
  func.func @transform_2(%arg0: i32) -> (i32, i32) {
    %c0_i32 = arith.constant 0 : i32
    %c0_i32_0 = arith.constant 0 : i32
    %c0_i32_1 = arith.constant 0 : i32
    return %c0_i32, %c0_i32_0 : i32, i32
  }
  func.func @transform_3(%arg0: i32) -> (i32, i32) {
    %c0_i32 = arith.constant 0 : i32
    %c0_i32_0 = arith.constant 0 : i32
    %c0_i32_1 = arith.constant 0 : i32
    return %c0_i32, %c0_i32_0 : i32, i32
  }
  func.func @transform_4(%arg0: i32) -> (i32, i32) {
    %c0_i32 = arith.constant 0 : i32
    %c0_i32_0 = arith.constant 0 : i32
    %c0_i32_1 = arith.constant 0 : i32
    return %c0_i32, %c0_i32_0 : i32, i32
  }
  func.func @transform_5(%arg0: i32) -> (i32, i32) {
    %c0_i32 = arith.constant 0 : i32
    %c0_i32_0 = arith.constant 0 : i32
    return %arg0, %c0_i32 : i32, i32
  }
}

</mosaic_0001>

<llo_original>
// kernel: classifier_forward.1
$region0: #{classifier_forward.1}
  #allocation0 [shape = 'u32[]', space=smem, size = 0x4, offset = 0x4, fixed_abs, tag = 'smem constant byte address 0x4 - core index']
  #allocation1 [shape = 'u32[144,128]{1,0:T(1,128)}', space=vmem, size = 0x12000, scoped, tag = 'internal scratch']
  %s0 = inlined_call_operand.hbm [shape: f32[32,784], index: 0, kind: input, shape index: {}]
  %s1 = inlined_call_operand.hbm [shape: bf16[784,128], index: 1, kind: input, shape index: {}]
  %s2 = inlined_call_operand.vmem [shape: f32[1,128], index: 2, kind: input, shape index: {}]
  %s3 = inlined_call_operand.hbm [shape: bf16[128,128], index: 3, kind: input, shape index: {}]
  %s4 = inlined_call_operand.vmem [shape: f32[1,128], index: 4, kind: input, shape index: {}]
  %s5 = inlined_call_operand.vmem [shape: f32[32,128], index: 5, kind: output, shape index: {}]
  %s6 = sld [smem:[#allocation0]]
  $region65: #{classifier_forward.1} parent=0
    _
  %s8 = ssub.s32 1, %s6
  %s9 = scalar_select 0, %s8, %s6
  $region1: #{classifier_forward.1} parent=0
    #allocation2 [shape = 'u8[114688]{0}', space=vmem, size = 0x1c000, scoped, tag = 'input window, operand 0']
    #allocation3 [shape = 's32[2]{0}', space=sflag, size = 0x8, scoped, tag = 'scoped memory for classifier_forward.1']
    #allocation4 [shape = 'u8[200704]{0}', space=vmem, size = 0x31000, scoped, tag = 'input window, operand 1, single buffered']
    #allocation5 [shape = 's32[1]{0}', space=sflag, size = 0x4, scoped, tag = 'scoped memory for classifier_forward.1']
    #allocation6 [shape = 'u8[32768]{0}', space=vmem, size = 0x8000, scoped, tag = 'input window, operand 3, single buffered']
    %10 = vsyncpa [#allocation3], 0
    %s11 = scalar_lea.sflag [#allocation3], 1
    %12 = vsyncpa %s11, 0
    %13 = vsyncpa [#allocation5], 0
    loop: start=0, step=1, limit=4
    $region2: #{classifier_forward.1} parent=1 // loop_pre_header
      _
    $region3: #{classifier_forward.1} parent=1 // loop_header
      %s15 = sphi 0, %s19
      %p16 = scmp.ge.s32.totalorder %s15, 4
      %s25 = sphi 0, %s27
      %s28 = sphi 0, %s25
      %s29 = sphi 0, %s28
      %s45 = sphi 0, %s29
      %s49 = sphi 0, %s49
      %s51 = sphi 0, %s49
      %s52 = sphi 0, %s51
      %s66 = sphi 0, %s52
      %s70 = sphi 0, %s70
      %s72 = sphi 0, %s70
      %s73 = sphi 0, %s72
      %s87 = sphi 0, %s73
      %s91 = sphi 0, %s91
      %s93 = sphi 0, %s91
      %s94 = sphi 0, %s93
      %s108 = sphi 0, %s94
      %s112 = sphi 0, %s112
      %s114 = sphi 0, %s112
      %s115 = sphi 0, %s114
      %s129 = sphi 0, %s115
      %s135 = sphi 0, %s137
      %s138 = sphi 0, %s135
      %s139 = sphi 0, %s138
      %s155 = sphi 0, %s139
    $region4: #{classifier_forward.1} parent=1 // loop_header_branch
      %18 = sbr.rel (%p16) target = $region8
    $region5: #{classifier_forward.1} parent=1 // loop_body
      %s20 = ssub.s32 %s15, 1
      %s21 = ssub.s32 %s15, 2
      %s22 = sadd.s32 %s15, 1
      %s23 = ssub.s32 %s15, %s22
      %p24 = scmp.eq.s32.totalorder %s23, 0
      %s26 = sadd.s32 %s25, 1
      %s27 = scalar_select %p24, %s25, %s26
      %p30 = pneg %p24
      %p31 = scmp.eq.s32.totalorder %s15, 1
      %p32 = por %p30, %p31
      %p33 = scmp.ne.s32.totalorder %s25, %s28
      %p34 = scmp.eq.s32.totalorder %s15, 0
      %p35 = por %p33, %p34
      %p36 = scmp.ne.s32.totalorder %s25, %s28
      %p37 = scmp.eq.s32.totalorder %s20, 1
      %p38 = por %p36, %p37
      %p39 = scmp.ne.s32.totalorder %s28, %s29
      %p40 = scmp.eq.s32.totalorder %s20, 0
      %p41 = por %p39, %p40
      %p42 = scmp.ne.s32.totalorder %s28, %s29
      %p43 = scmp.eq.s32.totalorder %s21, 1
      %p44 = por %p42, %p43
      %p46 = scmp.ne.s32.totalorder %s29, %s45
      %p47 = scmp.eq.s32.totalorder %s21, 0
      %p48 = por %p46, %p47
      %s50 = sadd.s32 %s49, 1
      %p53 = scmp.eq.s32.totalorder %s15, 1
      %p54 = scmp.ne.s32.totalorder %s49, %s51
      %p55 = scmp.eq.s32.totalorder %s15, 0
      %p56 = por %p54, %p55
      %p57 = scmp.ne.s32.totalorder %s49, %s51
      %p58 = scmp.eq.s32.totalorder %s20, 1
      %p59 = por %p57, %p58
      %p60 = scmp.ne.s32.totalorder %s51, %s52
      %p61 = scmp.eq.s32.totalorder %s20, 0
      %p62 = por %p60, %p61
      %p63 = scmp.ne.s32.totalorder %s51, %s52
      %p64 = scmp.eq.s32.totalorder %s21, 1
      %p65 = por %p63, %p64
      %p67 = scmp.ne.s32.totalorder %s52, %s66
      %p68 = scmp.eq.s32.totalorder %s21, 0
      %p69 = por %p67, %p68
      %s71 = sadd.s32 %s70, 1
      %p74 = scmp.eq.s32.totalorder %s15, 1
      %p75 = scmp.ne.s32.totalorder %s70, %s72
      %p76 = scmp.eq.s32.totalorder %s15, 0
      %p77 = por %p75, %p76
      %p78 = scmp.ne.s32.totalorder %s70, %s72
      %p79 = scmp.eq.s32.totalorder %s20, 1
      %p80 = por %p78, %p79
      %p81 = scmp.ne.s32.totalorder %s72, %s73
      %p82 = scmp.eq.s32.totalorder %s20, 0
      %p83 = por %p81, %p82
      %p84 = scmp.ne.s32.totalorder %s72, %s73
      %p85 = scmp.eq.s32.totalorder %s21, 1
      %p86 = por %p84, %p85
      %p88 = scmp.ne.s32.totalorder %s73, %s87
      %p89 = scmp.eq.s32.totalorder %s21, 0
      %p90 = por %p88, %p89
      %s92 = sadd.s32 %s91, 1
      %p95 = scmp.eq.s32.totalorder %s15, 1
      %p96 = scmp.ne.s32.totalorder %s91, %s93
      %p97 = scmp.eq.s32.totalorder %s15, 0
      %p98 = por %p96, %p97
      %p99 = scmp.ne.s32.totalorder %s91, %s93
      %p100 = scmp.eq.s32.totalorder %s20, 1
      %p101 = por %p99, %p100
      %p102 = scmp.ne.s32.totalorder %s93, %s94
      %p103 = scmp.eq.s32.totalorder %s20, 0
      %p104 = por %p102, %p103
      %p105 = scmp.ne.s32.totalorder %s93, %s94
      %p106 = scmp.eq.s32.totalorder %s21, 1
      %p107 = por %p105, %p106
      %p109 = scmp.ne.s32.totalorder %s94, %s108
      %p110 = scmp.eq.s32.totalorder %s21, 0
      %p111 = por %p109, %p110
      %s113 = sadd.s32 %s112, 1
      %p116 = scmp.eq.s32.totalorder %s15, 1
      %p117 = scmp.ne.s32.totalorder %s112, %s114
      %p118 = scmp.eq.s32.totalorder %s15, 0
      %p119 = por %p117, %p118
      %p120 = scmp.ne.s32.totalorder %s112, %s114
      %p121 = scmp.eq.s32.totalorder %s20, 1
      %p122 = por %p120, %p121
      %p123 = scmp.ne.s32.totalorder %s114, %s115
      %p124 = scmp.eq.s32.totalorder %s20, 0
      %p125 = por %p123, %p124
      %p126 = scmp.ne.s32.totalorder %s114, %s115
      %p127 = scmp.eq.s32.totalorder %s21, 1
      %p128 = por %p126, %p127
      %p130 = scmp.ne.s32.totalorder %s115, %s129
      %p131 = scmp.eq.s32.totalorder %s21, 0
      %p132 = por %p130, %p131
      %s133 = ssub.s32 %s15, %s22
      %p134 = scmp.eq.s32.totalorder %s133, 0
      %s136 = sadd.s32 %s135, 1
      %s137 = scalar_select %p134, %s135, %s136
      %p140 = pneg %p134
      %p141 = scmp.eq.s32.totalorder %s15, 1
      %p142 = por %p140, %p141
      %p143 = scmp.ne.s32.totalorder %s135, %s138
      %p144 = scmp.eq.s32.totalorder %s15, 0
      %p145 = por %p143, %p144
      %p146 = scmp.ne.s32.totalorder %s135, %s138
      %p147 = scmp.eq.s32.totalorder %s20, 1
      %p148 = por %p146, %p147
      %p149 = scmp.ne.s32.totalorder %s138, %s139
      %p150 = scmp.eq.s32.totalorder %s20, 0
      %p151 = por %p149, %p150
      %p152 = scmp.ne.s32.totalorder %s138, %s139
      %p153 = scmp.eq.s32.totalorder %s21, 1
      %p154 = por %p152, %p153
      %p156 = scmp.ne.s32.totalorder %s139, %s155
      %p157 = scmp.eq.s32.totalorder %s21, 0
      %p158 = por %p156, %p157
      %p159 = scmp.le.s32.totalorder 1, %s15
      %p160 = scmp.lt.s32.totalorder %s15, 3
      %p161 = pnand %p159, %p160
      %p162 = pneg %p161
      // Predicated region
      $region9: #{classifier_forward.1} parent=5 // pred_check
        _
      $region10: #{classifier_forward.1} parent=5 // pred_check_branch
        %164 = sbr.rel (%p161) target = $region12
      $region11: #{classifier_forward.1} parent=5 // pred_region
        %s165 = ssub.s32 %s15, 1
        // Predicated region
        $region13: #{classifier_forward.1} parent=11 // pred_check
          %p166 = pneg %p62
        $region14: #{classifier_forward.1} parent=11 // pred_check_branch
          %168 = sbr.rel (%p166) target = $region16
        $region15: #{classifier_forward.1} parent=11 // pred_region
          %s170 = ssub.s32 6272, 6272
          %171 = vsyncadd [#allocation5], %s170
          %s172 = sshll.u32 [#allocation4], 4
          %s173 = int_to_ptr.vmem [resolvable:$true] %s172
          %178 = dma.hbm_to_vmem [thread:$0]  %s1, 6272, %s173, [#allocation5], 64, 64, 4
        $region16: #{classifier_forward.1} parent=11 // pred_fallthru
          _
        // Predicated region
        $region17: #{classifier_forward.1} parent=11 // pred_check
          %p179 = pneg %p83
        $region18: #{classifier_forward.1} parent=11 // pred_check_branch
          %181 = sbr.rel (%p179) target = $region20
        $region19: #{classifier_forward.1} parent=11 // pred_region
          _
        $region20: #{classifier_forward.1} parent=11 // pred_fallthru
          _
        // Predicated region
        $region21: #{classifier_forward.1} parent=11 // pred_check
          %p182 = pneg %p104
        $region22: #{classifier_forward.1} parent=11 // pred_check_branch
          %184 = sbr.rel (%p182) target = $region24
        $region23: #{classifier_forward.1} parent=11 // pred_region
          %s186 = ssub.s32 1024, 1024
          %187 = vsyncadd [#allocation5], %s186
          %s188 = sshll.u32 [#allocation6], 4
          %s189 = int_to_ptr.vmem [resolvable:$true] %s188
          %194 = dma.hbm_to_vmem [thread:$0]  %s3, 1024, %s189, [#allocation5], 64, 64, 4
        $region24: #{classifier_forward.1} parent=11 // pred_fallthru
          _
        // Predicated region
        $region25: #{classifier_forward.1} parent=11 // pred_check
          %p195 = pneg %p125
        $region26: #{classifier_forward.1} parent=11 // pred_check_branch
          %197 = sbr.rel (%p195) target = $region28
        $region27: #{classifier_forward.1} parent=11 // pred_region
          _
        $region28: #{classifier_forward.1} parent=11 // pred_fallthru
          _
      $region12: #{classifier_forward.1} parent=5 // pred_fallthru
        _
      %p198 = scmp.lt.s32.totalorder %s15, 2
      // Predicated region
      $region29: #{classifier_forward.1} parent=5 // pred_check
        %p199 = pneg %p198
      $region30: #{classifier_forward.1} parent=5 // pred_check_branch
        %201 = sbr.rel (%p199) target = $region32
      $region31: #{classifier_forward.1} parent=5 // pred_region
        // Predicated region
        $region33: #{classifier_forward.1} parent=31 // pred_check
          %p202 = pneg %p35
        $region34: #{classifier_forward.1} parent=31 // pred_check_branch
          %204 = sbr.rel (%p202) target = $region36
        $region35: #{classifier_forward.1} parent=31 // pred_region
          %s205 = sand.u32 %s25, 1
          %s206 = scalar_lea.sflag [#allocation3], %s205
          %s207 = sand.u32 %s25, 1
          %s208 = smul.addr %s207, 112
          %s209 = scalar_lea.vmem [#allocation2], %s208
          %s210 = smul.u32 2, %s15
          %s212 = ssub.s32 1792, 1792
          %213 = vsyncadd %s206, %s212
          %s214 = smul.addr %s210, 7
          %s215 = smul.addr %s214, 128
          %s216 = scalar_lea.hbm %s0, %s215
          %s217 = sshll.u32 %s209, 4
          %s218 = int_to_ptr.vmem [resolvable:$true] %s217
          %223 = dma.hbm_to_vmem [thread:$0]  %s216, 1792, %s218, %s206, 896, 896, 56
        $region36: #{classifier_forward.1} parent=31 // pred_fallthru
          _
      $region32: #{classifier_forward.1} parent=5 // pred_fallthru
        _
      %p224 = scmp.le.s32.totalorder 1, %s15
      %p225 = scmp.lt.s32.totalorder %s15, 3
      %p226 = pnand %p224, %p225
      %p227 = pneg %p226
      // Predicated region
      $region37: #{classifier_forward.1} parent=5 // pred_check
        _
      $region38: #{classifier_forward.1} parent=5 // pred_check_branch
        %229 = sbr.rel (%p226) target = $region40
      $region39: #{classifier_forward.1} parent=5 // pred_region
        %s230 = ssub.s32 %s15, 1
        %s231 = sand.u32 %s28, 1
        %s232 = scalar_lea.sflag [#allocation3], %s231
        %s233 = sand.u32 %s28, 1
        %s234 = smul.addr %s233, 112
        %s235 = scalar_lea.vmem [#allocation2], %s234
        // Predicated region
        $region41: #{classifier_forward.1} parent=39 // pred_check
          %p236 = pneg %p41
        $region42: #{classifier_forward.1} parent=39 // pred_check_branch
          %238 = sbr.rel (%p236) target = $region44
        $region43: #{classifier_forward.1} parent=39 // pred_region
          %239 = dma.done %s232, 1792
        $region44: #{classifier_forward.1} parent=39 // pred_fallthru
          _
        // Predicated region
        $region45: #{classifier_forward.1} parent=39 // pred_check
          %p240 = pneg %p62
        $region46: #{classifier_forward.1} parent=39 // pred_check_branch
          %242 = sbr.rel (%p240) target = $region48
        $region47: #{classifier_forward.1} parent=39 // pred_region
          %243 = dma.done [#allocation5], 6272
        $region48: #{classifier_forward.1} parent=39 // pred_fallthru
          _
        // Predicated region
        $region49: #{classifier_forward.1} parent=39 // pred_check
          %p244 = pneg %p104
        $region50: #{classifier_forward.1} parent=39 // pred_check_branch
          %246 = sbr.rel (%p244) target = $region52
        $region51: #{classifier_forward.1} parent=39 // pred_region
          %247 = dma.done [#allocation5], 1024
        $region52: #{classifier_forward.1} parent=39 // pred_fallthru
          _
        %s248 = sand.u32 %s28, 1
        %s249 = scalar_lea.sflag [#allocation3], %s248
        %s250 = sand.u32 %s28, 1
        %s251 = smul.addr %s250, 112
        %s252 = scalar_lea.vmem [#allocation2], %s251
        %p253 = pneg %p41
        %p254 = pneg %p38
        %p255 = pneg %p62
        %p256 = pneg %p59
        %p257 = pneg %p83
        %p258 = pneg %p80
        %p259 = pneg %p104
        %p260 = pneg %p101
        %p261 = pneg %p125
        %p262 = pneg %p122
        %p263 = pneg %p151
        %p264 = pneg %p148
        %s265 = smul.u32 2, %s20
        %p266 = scmp.lt.s32.totalorder %s265, 3
        %s267 = scalar_select %p266, %s265, 3
        %s268 = smul.addr %s267, 8
        %s269 = scalar_lea.vmem %s5, %s268
        %s270 = smul.u32 2, %s20
        %s271 = smul.u32 2, %s20
        %p272 = scmp.lt.s32.totalorder %s271, 3
        %s273 = scalar_select %p272, %s271, 3
        %s274 = smul.addr %s273, 8
        %s275 = scalar_lea.vmem %s5, %s274
        %s276 = smul.u32 2, %s20
        %v278 = vld [vmem:[%s235] sm:$0xff]
        %v279 = vld [vmem:[%s235 + $0x8] sm:$0xff]
        %v280 = vld [vmem:[%s235 + $0x10] sm:$0xff]
        %v281 = vld [vmem:[%s235 + $0x18] sm:$0xff]
        %v282 = vld [vmem:[%s235 + $0x20] sm:$0xff]
        %v283 = vld [vmem:[%s235 + $0x28] sm:$0xff]
        %v284 = vld [vmem:[%s235 + $0x30] sm:$0xff]
        %v285 = vld [vmem:[%s235 + $0x38] sm:$0xff]
        %v286 = vld [vmem:[%s235 + $0x40] sm:$0xff]
        %v287 = vld [vmem:[%s235 + $0x48] sm:$0xff]
        %v288 = vld [vmem:[%s235 + $0x50] sm:$0xff]
        %v289 = vld [vmem:[%s235 + $0x58] sm:$0xff]
        %v290 = vld [vmem:[%s235 + $0x60] sm:$0xff]
        %v291 = vld [vmem:[%s235 + $0x68] sm:$0xff]
        %v292 = vpack.c.bf16 %v285, %v278
        %v293 = vpack.c.bf16 %v286, %v279
        %v294 = vpack.c.bf16 %v287, %v280
        %v295 = vpack.c.bf16 %v288, %v281
        %v296 = vpack.c.bf16 %v289, %v282
        %v297 = vpack.c.bf16 %v290, %v283
        %v298 = vpack.c.bf16 %v291, %v284
        %v299 = vld [vmem:[#allocation4] sm:$0xf]
        %v300 = vld [vmem:[#allocation4 + $0x4] sm:$0xf]
        %v301 = vld [vmem:[#allocation4 + $0x8] sm:$0xf]
        %v302 = vld [vmem:[#allocation4 + $0xc] sm:$0xf]
        %v303 = vld [vmem:[#allocation4 + $0x10] sm:$0xf]
        %v304 = vld [vmem:[#allocation4 + $0x14] sm:$0xf]
        %v305 = vld [vmem:[#allocation4 + $0x18] sm:$0xf]
        %v306 = vld [vmem:[#allocation4 + $0x1c] sm:$0xf]
        %v307 = vld [vmem:[#allocation4 + $0x20] sm:$0xf]
        %v308 = vld [vmem:[#allocation4 + $0x24] sm:$0xf]
        %v309 = vld [vmem:[#allocation4 + $0x28] sm:$0xf]
        %v310 = vld [vmem:[#allocation4 + $0x2c] sm:$0xf]
        %v311 = vld [vmem:[#allocation4 + $0x30] sm:$0xf]
        %v312 = vld [vmem:[#allocation4 + $0x34] sm:$0xf]
        %v313 = vld [vmem:[#allocation4 + $0x38] sm:$0xf]
        %v314 = vld [vmem:[#allocation4 + $0x3c] sm:$0xf]
        %v315 = vld [vmem:[#allocation4 + $0x40] sm:$0xf]
        %v316 = vld [vmem:[#allocation4 + $0x44] sm:$0xf]
        %v317 = vld [vmem:[#allocation4 + $0x48] sm:$0xf]
        %v318 = vld [vmem:[#allocation4 + $0x4c] sm:$0xf]
        %v319 = vld [vmem:[#allocation4 + $0x50] sm:$0xf]
        %v320 = vld [vmem:[#allocation4 + $0x54] sm:$0xf]
        %v321 = vld [vmem:[#allocation4 + $0x58] sm:$0xf]
        %v322 = vld [vmem:[#allocation4 + $0x5c] sm:$0xf]
        %v323 = vld [vmem:[#allocation4 + $0x60] sm:$0xf]
        %v324 = vld [vmem:[#allocation4 + $0x64] sm:$0xf]
        %v325 = vld [vmem:[#allocation4 + $0x68] sm:$0xf]
        %v326 = vld [vmem:[#allocation4 + $0x6c] sm:$0xf]
        %v327 = vld [vmem:[#allocation4 + $0x70] sm:$0xf]
        %v328 = vld [vmem:[#allocation4 + $0x74] sm:$0xf]
        %v329 = vld [vmem:[#allocation4 + $0x78] sm:$0xf]
        %v330 = vld [vmem:[#allocation4 + $0x7c] sm:$0xf]
        %v331 = vld [vmem:[#allocation4 + $0x80] sm:$0xf]
        %v332 = vld [vmem:[#allocation4 + $0x84] sm:$0xf]
        %v333 = vld [vmem:[#allocation4 + $0x88] sm:$0xf]
        %v334 = vld [vmem:[#allocation4 + $0x8c] sm:$0xf]
        %v335 = vld [vmem:[#allocation4 + $0x90] sm:$0xf]
        %v336 = vld [vmem:[#allocation4 + $0x94] sm:$0xf]
        %v337 = vld [vmem:[#allocation4 + $0x98] sm:$0xf]
        %v338 = vld [vmem:[#allocation4 + $0x9c] sm:$0xf]
        %v339 = vld [vmem:[#allocation4 + $0xa0] sm:$0xf]
        %v340 = vld [vmem:[#allocation4 + $0xa4] sm:$0xf]
        %v341 = vld [vmem:[#allocation4 + $0xa8] sm:$0xf]
        %v342 = vld [vmem:[#allocation4 + $0xac] sm:$0xf]
        %v343 = vld [vmem:[#allocation4 + $0xb0] sm:$0xf]
        %v344 = vld [vmem:[#allocation4 + $0xb4] sm:$0xf]
        %v345 = vld [vmem:[#allocation4 + $0xb8] sm:$0xf]
        %v346 = vld [vmem:[#allocation4 + $0xbc] sm:$0xf]
        %v347 = vld [vmem:[#allocation4 + $0xc0] sm:$0xf]
        %v348 = vld [vmem:[#allocation4 + $0xc4] sm:$0xf]
        %v349 = vld [vmem:[#allocation4 + $0xc8] sm:$0xf]
        %v350 = vld [vmem:[#allocation4 + $0xcc] sm:$0xf]
        %v351 = vld [vmem:[#allocation4 + $0xd0] sm:$0xf]
        %v352 = vld [vmem:[#allocation4 + $0xd4] sm:$0xf]
        %v353 = vld [vmem:[#allocation4 + $0xd8] sm:$0xf]
        %v354 = vld [vmem:[#allocation4 + $0xdc] sm:$0xf]
        %v355 = vld [vmem:[#allocation4 + $0xe0] sm:$0xf]
        %v356 = vld [vmem:[#allocation4 + $0xe4] sm:$0xf]
        %v357 = vld [vmem:[#allocation4 + $0xe8] sm:$0xf]
        %v358 = vld [vmem:[#allocation4 + $0xec] sm:$0xf]
        %v359 = vld [vmem:[#allocation4 + $0xf0] sm:$0xf]
        %v360 = vld [vmem:[#allocation4 + $0xf4] sm:$0xf]
        %v361 = vld [vmem:[#allocation4 + $0xf8] sm:$0xf]
        %v362 = vld [vmem:[#allocation4 + $0xfc] sm:$0xf]
        %v363 = vld [vmem:[#allocation4 + $0x100] sm:$0xf]
        %v364 = vld [vmem:[#allocation4 + $0x104] sm:$0xf]
        %v365 = vld [vmem:[#allocation4 + $0x108] sm:$0xf]
        %v366 = vld [vmem:[#allocation4 + $0x10c] sm:$0xf]
        %v367 = vld [vmem:[#allocation4 + $0x110] sm:$0xf]
        %v368 = vld [vmem:[#allocation4 + $0x114] sm:$0xf]
        %v369 = vld [vmem:[#allocation4 + $0x118] sm:$0xf]
        %v370 = vld [vmem:[#allocation4 + $0x11c] sm:$0xf]
        %v371 = vld [vmem:[#allocation4 + $0x120] sm:$0xf]
        %v372 = vld [vmem:[#allocation4 + $0x124] sm:$0xf]
        %v373 = vld [vmem:[#allocation4 + $0x128] sm:$0xf]
        %v374 = vld [vmem:[#allocation4 + $0x12c] sm:$0xf]
        %v375 = vld [vmem:[#allocation4 + $0x130] sm:$0xf]
        %v376 = vld [vmem:[#allocation4 + $0x134] sm:$0xf]
        %v377 = vld [vmem:[#allocation4 + $0x138] sm:$0xf]
        %v378 = vld [vmem:[#allocation4 + $0x13c] sm:$0xf]
        %v379 = vld [vmem:[#allocation4 + $0x140] sm:$0xf]
        %v380 = vld [vmem:[#allocation4 + $0x144] sm:$0xf]
        %v381 = vld [vmem:[#allocation4 + $0x148] sm:$0xf]
        %v382 = vld [vmem:[#allocation4 + $0x14c] sm:$0xf]
        %v383 = vld [vmem:[#allocation4 + $0x150] sm:$0xf]
        %v384 = vld [vmem:[#allocation4 + $0x154] sm:$0xf]
        %v385 = vld [vmem:[#allocation4 + $0x158] sm:$0xf]
        %v386 = vld [vmem:[#allocation4 + $0x15c] sm:$0xf]
        %v387 = vld [vmem:[#allocation4 + $0x160] sm:$0xf]
        %v388 = vld [vmem:[#allocation4 + $0x164] sm:$0xf]
        %v389 = vld [vmem:[#allocation4 + $0x168] sm:$0xf]
        %v390 = vld [vmem:[#allocation4 + $0x16c] sm:$0xf]
        %v391 = vld [vmem:[#allocation4 + $0x170] sm:$0xf]
        %v392 = vld [vmem:[#allocation4 + $0x174] sm:$0xf]
        %v393 = vld [vmem:[#allocation4 + $0x178] sm:$0xf]
        %v394 = vld [vmem:[#allocation4 + $0x17c] sm:$0xf]
        %v395 = vld [vmem:[#allocation4 + $0x180] sm:$0xf]
        %v396 = vld [vmem:[#allocation4 + $0x184] sm:$0xf]
        %v397 = vld [vmem:[%s2] sm:$0x1]
        %v399 = vlaneseq
        %v400 = vshrl.u32 %v399, 7
        %v401 = vsub.s32 0, %v400
        %v402 = vrot.slane %v397, %v401
        %v502 = vunpack.c.l.b16 %v299
        %v503 = vunpack.c.l.b16 %v300
        %v504 = vunpack.c.l.b16 %v301
        %v505 = vunpack.c.l.b16 %v302
        %v506 = vunpack.c.l.b16 %v303
        %v507 = vunpack.c.l.b16 %v304
        %v508 = vunpack.c.l.b16 %v305
        %v509 = vunpack.c.l.b16 %v306
        %v510 = vunpack.c.l.b16 %v307
        %v511 = vunpack.c.l.b16 %v308
        %v512 = vunpack.c.l.b16 %v309
        %v513 = vunpack.c.l.b16 %v310
        %v514 = vunpack.c.l.b16 %v311
        %v515 = vunpack.c.l.b16 %v312
        %v516 = vunpack.c.l.b16 %v313
        %v517 = vunpack.c.l.b16 %v314
        %v518 = vunpack.c.l.b16 %v315
        %v519 = vunpack.c.l.b16 %v316
        %v520 = vunpack.c.l.b16 %v317
        %v521 = vunpack.c.l.b16 %v318
        %v522 = vunpack.c.l.b16 %v319
        %v523 = vunpack.c.l.b16 %v320
        %v524 = vunpack.c.l.b16 %v321
        %v525 = vunpack.c.l.b16 %v322
        %v526 = vunpack.c.l.b16 %v323
        %v527 = vunpack.c.l.b16 %v324
        %v528 = vunpack.c.l.b16 %v325
        %v529 = vunpack.c.l.b16 %v326
        %v530 = vunpack.c.l.b16 %v327
        %v531 = vunpack.c.l.b16 %v328
        %v532 = vunpack.c.l.b16 %v329
        %v533 = vunpack.c.l.b16 %v330
        %v534 = vunpack.c.l.b16 %v331
        %v535 = vunpack.c.l.b16 %v332
        %v536 = vunpack.c.l.b16 %v333
        %v537 = vunpack.c.l.b16 %v334
        %v538 = vunpack.c.l.b16 %v335
        %v539 = vunpack.c.l.b16 %v336
        %v540 = vunpack.c.l.b16 %v337
        %v541 = vunpack.c.l.b16 %v338
        %v542 = vunpack.c.l.b16 %v339
        %v543 = vunpack.c.l.b16 %v340
        %v544 = vunpack.c.l.b16 %v341
        %v545 = vunpack.c.l.b16 %v342
        %v546 = vunpack.c.l.b16 %v343
        %v547 = vunpack.c.l.b16 %v344
        %v548 = vunpack.c.l.b16 %v345
        %v549 = vunpack.c.l.b16 %v346
        %v550 = vunpack.c.l.b16 %v347
        %v551 = vunpack.c.l.b16 %v348
        %v552 = vunpack.c.l.b16 %v349
        %v553 = vunpack.c.l.b16 %v350
        %v554 = vunpack.c.l.b16 %v351
        %v555 = vunpack.c.l.b16 %v352
        %v556 = vunpack.c.l.b16 %v353
        %v557 = vunpack.c.l.b16 %v354
        %v558 = vunpack.c.l.b16 %v355
        %v559 = vunpack.c.l.b16 %v356
        %v560 = vunpack.c.l.b16 %v357
        %v561 = vunpack.c.l.b16 %v358
        %v562 = vunpack.c.l.b16 %v359
        %v563 = vunpack.c.l.b16 %v360
        %v564 = vunpack.c.l.b16 %v361
        %v565 = vunpack.c.l.b16 %v362
        %v566 = vunpack.c.l.b16 %v363
        %v567 = vunpack.c.l.b16 %v364
        %v568 = vunpack.c.l.b16 %v365
        %v569 = vunpack.c.l.b16 %v366
        %v570 = vunpack.c.l.b16 %v367
        %v571 = vunpack.c.l.b16 %v368
        %v572 = vunpack.c.l.b16 %v369
        %v573 = vunpack.c.l.b16 %v370
        %v574 = vunpack.c.l.b16 %v371
        %v575 = vunpack.c.l.b16 %v372
        %v576 = vunpack.c.l.b16 %v373
        %v577 = vunpack.c.l.b16 %v374
        %v578 = vunpack.c.l.b16 %v375
        %v579 = vunpack.c.l.b16 %v376
        %v580 = vunpack.c.l.b16 %v377
        %v581 = vunpack.c.l.b16 %v378
        %v582 = vunpack.c.l.b16 %v379
        %v583 = vunpack.c.l.b16 %v380
        %v584 = vunpack.c.l.b16 %v381
        %v585 = vunpack.c.l.b16 %v382
        %v586 = vunpack.c.l.b16 %v383
        %v587 = vunpack.c.l.b16 %v384
        %v588 = vunpack.c.l.b16 %v385
        %v589 = vunpack.c.l.b16 %v386
        %v590 = vunpack.c.l.b16 %v387
        %v591 = vunpack.c.l.b16 %v388
        %v592 = vunpack.c.l.b16 %v389
        %v593 = vunpack.c.l.b16 %v390
        %v594 = vunpack.c.l.b16 %v391
        %v595 = vunpack.c.l.b16 %v392
        %v596 = vunpack.c.l.b16 %v393
        %v597 = vunpack.c.l.b16 %v394
        %v598 = vunpack.c.l.b16 %v395
        %v599 = vunpack.c.l.b16 %v396
        %v600 = vpack.c.b16 %v503, %v502
        %v601 = vpack.c.b16 %v505, %v504
        %v602 = vpack.c.b16 %v507, %v506
        %v603 = vpack.c.b16 %v509, %v508
        %v604 = vpack.c.b16 %v511, %v510
        %v605 = vpack.c.b16 %v513, %v512
        %v606 = vpack.c.b16 %v515, %v514
        %v607 = vpack.c.b16 %v517, %v516
        %v608 = vpack.c.b16 %v519, %v518
        %v609 = vpack.c.b16 %v521, %v520
        %v610 = vpack.c.b16 %v523, %v522
        %v611 = vpack.c.b16 %v525, %v524
        %v612 = vpack.c.b16 %v527, %v526
        %v613 = vpack.c.b16 %v529, %v528
        %v614 = vpack.c.b16 %v531, %v530
        %v615 = vpack.c.b16 %v533, %v532
        %v616 = vpack.c.b16 %v535, %v534
        %v617 = vpack.c.b16 %v537, %v536
        %v618 = vpack.c.b16 %v539, %v538
        %v619 = vpack.c.b16 %v541, %v540
        %v620 = vpack.c.b16 %v543, %v542
        %v621 = vpack.c.b16 %v545, %v544
        %v622 = vpack.c.b16 %v547, %v546
        %v623 = vpack.c.b16 %v549, %v548
        %v624 = vpack.c.b16 %v551, %v550
        %v625 = vpack.c.b16 %v553, %v552
        %v626 = vpack.c.b16 %v555, %v554
        %v627 = vpack.c.b16 %v557, %v556
        %v628 = vpack.c.b16 %v559, %v558
        %v629 = vpack.c.b16 %v561, %v560
        %v630 = vpack.c.b16 %v563, %v562
        %v631 = vpack.c.b16 %v565, %v564
        %v632 = vpack.c.b16 %v567, %v566
        %v633 = vpack.c.b16 %v569, %v568
        %v634 = vpack.c.b16 %v571, %v570
        %v635 = vpack.c.b16 %v573, %v572
        %v636 = vpack.c.b16 %v575, %v574
        %v637 = vpack.c.b16 %v577, %v576
        %v638 = vpack.c.b16 %v579, %v578
        %v639 = vpack.c.b16 %v581, %v580
        %v640 = vpack.c.b16 %v583, %v582
        %v641 = vpack.c.b16 %v585, %v584
        %v642 = vpack.c.b16 %v587, %v586
        %v643 = vpack.c.b16 %v589, %v588
        %v644 = vpack.c.b16 %v591, %v590
        %v645 = vpack.c.b16 %v593, %v592
        %v646 = vpack.c.b16 %v595, %v594
        %v647 = vpack.c.b16 %v597, %v596
        %v648 = vpack.c.b16 %v599, %v598
        %vm698 = vcmask 130048
        %v700 = vsel %vm698, %v298, 0
        %702 = vmatprep.subr.bf16.mxu0 0
        %703 = vmatpush1.bf16.msra.mxu0 %v600
        %704 = vmatprep.subr.bf16.mxu0 0
        %705 = vmatpush1.bf16.msra.mxu0 %v601
        %706 = vmatprep.subr.bf16.mxu0 0
        %707 = vmatpush1.bf16.msra.mxu0 %v602
        %708 = vmatprep.subr.bf16.mxu0 0
        %709 = vmatpush1.bf16.msra.mxu0 %v603
        %710 = vmatprep.subr.bf16.mxu0 0
        %711 = vmatpush1.bf16.msra.mxu0 %v604
        %712 = vmatprep.subr.bf16.mxu0 0
        %713 = vmatpush1.bf16.msra.mxu0 %v605
        %714 = vmatprep.subr.bf16.mxu0 0
        %715 = vmatpush1.bf16.msra.mxu0 %v606
        %716 = vmatprep.subr.bf16.mxu0 0
        %717 = vmatpush1.bf16.msra.mxu0 %v607
        %718 = vmatprep.subr.bf16.mxu0 0
        %719 = vmatpush1.bf16.msra.mxu0 %v608
        %720 = vmatprep.subr.bf16.mxu0 0
        %721 = vmatpush1.bf16.msra.mxu0 %v609
        %722 = vmatprep.subr.bf16.mxu0 0
        %723 = vmatpush1.bf16.msra.mxu0 %v610
        %724 = vmatprep.subr.bf16.mxu0 0
        %725 = vmatpush1.bf16.msra.mxu0 %v611
        %726 = vmatprep.subr.bf16.mxu0 0
        %727 = vmatpush1.bf16.msra.mxu0 %v612
        %728 = vmatprep.subr.bf16.mxu0 0
        %729 = vmatpush1.bf16.msra.mxu0 %v613
        %730 = vmatprep.subr.bf16.mxu0 0
        %731 = vmatpush1.bf16.msra.mxu0 %v614
        %732 = vmatprep.subr.bf16.mxu0 0
        %733 = vmatpush1.bf16.msra.mxu0 %v615
        %734 = vmatprep.mubr.bf16.mxu0 %v293
        %735 = vmatmul.mubr.bf16.gmra.mrb[0].mxu0 %v292
        %v736 = vpop.f32.mrb[0].mxu0
        %v737 = vadd.f32 %v402, %v736
        %v738 = vpop.f32.mrb[0].mxu0
        %v739 = vpop.f32.mrb[0].mxu0
        %v740 = vadd.f32 %v402, %v739
        %v741 = vpop.f32.mrb[0].mxu0
        %742 = vdwg.mxu0
        %743 = vmatprep.subr.bf16.mxu0 0
        %744 = vmatpush1.bf16.msra.mxu0 %v616
        %745 = vmatprep.subr.bf16.mxu0 0
        %746 = vmatpush1.bf16.msra.mxu0 %v617
        %747 = vmatprep.subr.bf16.mxu0 0
        %748 = vmatpush1.bf16.msra.mxu0 %v618
        %749 = vmatprep.subr.bf16.mxu0 0
        %750 = vmatpush1.bf16.msra.mxu0 %v619
        %751 = vmatprep.subr.bf16.mxu0 0
        %752 = vmatpush1.bf16.msra.mxu0 %v620
        %753 = vmatprep.subr.bf16.mxu0 0
        %754 = vmatpush1.bf16.msra.mxu0 %v621
        %755 = vmatprep.subr.bf16.mxu0 0
        %756 = vmatpush1.bf16.msra.mxu0 %v622
        %757 = vmatprep.subr.bf16.mxu0 0
        %758 = vmatpush1.bf16.msra.mxu0 %v623
        %759 = vmatprep.subr.bf16.mxu0 0
        %760 = vmatpush1.bf16.msra.mxu0 %v624
        %761 = vmatprep.subr.bf16.mxu0 0
        %762 = vmatpush1.bf16.msra.mxu0 %v625
        %763 = vmatprep.subr.bf16.mxu0 0
        %764 = vmatpush1.bf16.msra.mxu0 %v626
        %765 = vmatprep.subr.bf16.mxu0 0
        %766 = vmatpush1.bf16.msra.mxu0 %v627
        %767 = vmatprep.subr.bf16.mxu0 0
        %768 = vmatpush1.bf16.msra.mxu0 %v628
        %769 = vmatprep.subr.bf16.mxu0 0
        %770 = vmatpush1.bf16.msra.mxu0 %v629
        %771 = vmatprep.subr.bf16.mxu0 0
        %772 = vmatpush1.bf16.msra.mxu0 %v630
        %773 = vmatprep.subr.bf16.mxu0 0
        %774 = vmatpush1.bf16.msra.mxu0 %v631
        %775 = vmatprep.mubr.bf16.mxu0 %v295
        %776 = vmatmul.mubr.bf16.gmra.mrb[0].mxu0 %v294
        %v777 = vpop.f32.mrb[0].mxu0
        %v778 = vadd.f32 %v737, %v777
        %v779 = vpop.f32.mrb[0].mxu0
        %v780 = vpop.f32.mrb[0].mxu0
        %v781 = vadd.f32 %v740, %v780
        %v782 = vpop.f32.mrb[0].mxu0
        %783 = vdwg.mxu0
        %784 = vmatprep.subr.bf16.mxu0 0
        %785 = vmatpush1.bf16.msra.mxu0 %v632
        %786 = vmatprep.subr.bf16.mxu0 0
        %787 = vmatpush1.bf16.msra.mxu0 %v633
        %788 = vmatprep.subr.bf16.mxu0 0
        %789 = vmatpush1.bf16.msra.mxu0 %v634
        %790 = vmatprep.subr.bf16.mxu0 0
        %791 = vmatpush1.bf16.msra.mxu0 %v635
        %792 = vmatprep.subr.bf16.mxu0 0
        %793 = vmatpush1.bf16.msra.mxu0 %v636
        %794 = vmatprep.subr.bf16.mxu0 0
        %795 = vmatpush1.bf16.msra.mxu0 %v637
        %796 = vmatprep.subr.bf16.mxu0 0
        %797 = vmatpush1.bf16.msra.mxu0 %v638
        %798 = vmatprep.subr.bf16.mxu0 0
        %799 = vmatpush1.bf16.msra.mxu0 %v639
        %800 = vmatprep.subr.bf16.mxu0 0
        %801 = vmatpush1.bf16.msra.mxu0 %v640
        %802 = vmatprep.subr.bf16.mxu0 0
        %803 = vmatpush1.bf16.msra.mxu0 %v641
        %804 = vmatprep.subr.bf16.mxu0 0
        %805 = vmatpush1.bf16.msra.mxu0 %v642
        %806 = vmatprep.subr.bf16.mxu0 0
        %807 = vmatpush1.bf16.msra.mxu0 %v643
        %808 = vmatprep.subr.bf16.mxu0 0
        %809 = vmatpush1.bf16.msra.mxu0 %v644
        %810 = vmatprep.subr.bf16.mxu0 0
        %811 = vmatpush1.bf16.msra.mxu0 %v645
        %812 = vmatprep.subr.bf16.mxu0 0
        %813 = vmatpush1.bf16.msra.mxu0 %v646
        %814 = vmatprep.subr.bf16.mxu0 0
        %815 = vmatpush1.bf16.msra.mxu0 %v647
        %816 = vmatprep.mubr.bf16.mxu0 %v297
        %817 = vmatmul.mubr.bf16.gmra.mrb[0].mxu0 %v296
        %v818 = vpop.f32.mrb[0].mxu0
        %v819 = vadd.f32 %v778, %v818
        %v820 = vpop.f32.mrb[0].mxu0
        %v821 = vpop.f32.mrb[0].mxu0
        %v822 = vadd.f32 %v781, %v821
        %v823 = vpop.f32.mrb[0].mxu0
        %824 = vdwg.mxu0
        %825 = vmatprep.subr.bf16.mxu0 0
        %826 = vmatpush1.bf16.msra.mxu0 %v648
        %827 = vmatprep.subr.bf16.mxu0 0
        %828 = vmatpush1.bf16.msra.mxu0 0
        %829 = vmatprep.subr.bf16.mxu0 0
        %830 = vmatpush1.bf16.msra.mxu0 0
        %831 = vmatprep.subr.bf16.mxu0 0
        %832 = vmatpush1.bf16.msra.mxu0 0
        %833 = vmatprep.subr.bf16.mxu0 0
        %834 = vmatpush1.bf16.msra.mxu0 0
        %835 = vmatprep.subr.bf16.mxu0 0
        %836 = vmatpush1.bf16.msra.mxu0 0
        %837 = vmatprep.subr.bf16.mxu0 0
        %838 = vmatpush1.bf16.msra.mxu0 0
        %839 = vmatprep.subr.bf16.mxu0 0
        %840 = vmatpush1.bf16.msra.mxu0 0
        %841 = vmatprep.subr.bf16.mxu0 0
        %842 = vmatpush1.bf16.msra.mxu0 0
        %843 = vmatprep.subr.bf16.mxu0 0
        %844 = vmatpush1.bf16.msra.mxu0 0
        %845 = vmatprep.subr.bf16.mxu0 0
        %846 = vmatpush1.bf16.msra.mxu0 0
        %847 = vmatprep.subr.bf16.mxu0 0
        %848 = vmatpush1.bf16.msra.mxu0 0
        %849 = vmatprep.subr.bf16.mxu0 0
        %850 = vmatpush1.bf16.msra.mxu0 0
        %851 = vmatprep.subr.bf16.mxu0 0
        %852 = vmatpush1.bf16.msra.mxu0 0
        %853 = vmatprep.subr.bf16.mxu0 0
        %854 = vmatpush1.bf16.msra.mxu0 0
        %855 = vmatprep.subr.bf16.mxu0 0
        %856 = vmatpush1.bf16.msra.mxu0 0
        %857 = vmatprep.mubr.bf16.mxu0 0
        %858 = vmatmul.mubr.bf16.gmra.mrb[0].mxu0 %v700
        %v859 = vpop.f32.mrb[0].mxu0
        %v860 = vadd.f32 %v819, %v859
        %v861 = vpop.f32.mrb[0].mxu0
        %v862 = vpop.f32.mrb[0].mxu0
        %v863 = vadd.f32 %v822, %v862
        %v864 = vpop.f32.mrb[0].mxu0
        %865 = vdwg.mxu0
        %v866 = vmax.f32 %v860, 0.0
        %v867 = vmax.f32 %v863, 0.0
        %v868 = vpack.c.bf16 %v867, %v866
        %v869 = vld [vmem:[#allocation6] sm:$0xf]
        %v870 = vld [vmem:[#allocation6 + $0x4] sm:$0xf]
        %v871 = vld [vmem:[#allocation6 + $0x8] sm:$0xf]
        %v872 = vld [vmem:[#allocation6 + $0xc] sm:$0xf]
        %v873 = vld [vmem:[#allocation6 + $0x10] sm:$0xf]
        %v874 = vld [vmem:[#allocation6 + $0x14] sm:$0xf]
        %v875 = vld [vmem:[#allocation6 + $0x18] sm:$0xf]
        %v876 = vld [vmem:[#allocation6 + $0x1c] sm:$0xf]
        %v877 = vld [vmem:[#allocation6 + $0x20] sm:$0xf]
        %v878 = vld [vmem:[#allocation6 + $0x24] sm:$0xf]
        %v879 = vld [vmem:[#allocation6 + $0x28] sm:$0xf]
        %v880 = vld [vmem:[#allocation6 + $0x2c] sm:$0xf]
        %v881 = vld [vmem:[#allocation6 + $0x30] sm:$0xf]
        %v882 = vld [vmem:[#allocation6 + $0x34] sm:$0xf]
        %v883 = vld [vmem:[#allocation6 + $0x38] sm:$0xf]
        %v884 = vld [vmem:[#allocation6 + $0x3c] sm:$0xf]
        %v885 = vld [vmem:[%s4] sm:$0x1]
        %v887 = vlaneseq
        %v888 = vshrl.u32 %v887, 7
        %v889 = vsub.s32 0, %v888
        %v890 = vrot.slane %v885, %v889
        %v908 = vunpack.c.l.b16 %v869
        %v909 = vunpack.c.l.b16 %v870
        %v910 = vunpack.c.l.b16 %v871
        %v911 = vunpack.c.l.b16 %v872
        %v912 = vunpack.c.l.b16 %v873
        %v913 = vunpack.c.l.b16 %v874
        %v914 = vunpack.c.l.b16 %v875
        %v915 = vunpack.c.l.b16 %v876
        %v916 = vunpack.c.l.b16 %v877
        %v917 = vunpack.c.l.b16 %v878
        %v918 = vunpack.c.l.b16 %v879
        %v919 = vunpack.c.l.b16 %v880
        %v920 = vunpack.c.l.b16 %v881
        %v921 = vunpack.c.l.b16 %v882
        %v922 = vunpack.c.l.b16 %v883
        %v923 = vunpack.c.l.b16 %v884
        %v924 = vpack.c.b16 %v909, %v908
        %v925 = vpack.c.b16 %v911, %v910
        %v926 = vpack.c.b16 %v913, %v912
        %v927 = vpack.c.b16 %v915, %v914
        %v928 = vpack.c.b16 %v917, %v916
        %v929 = vpack.c.b16 %v919, %v918
        %v930 = vpack.c.b16 %v921, %v920
        %v931 = vpack.c.b16 %v923, %v922
        %940 = vmatprep.subr.bf16.mxu0 0
        %941 = vmatpush1.bf16.msra.mxu0 %v924
        %942 = vmatprep.subr.bf16.mxu0 0
        %943 = vmatpush1.bf16.msra.mxu0 %v925
        %944 = vmatprep.subr.bf16.mxu0 0
        %945 = vmatpush1.bf16.msra.mxu0 %v926
        %946 = vmatprep.subr.bf16.mxu0 0
        %947 = vmatpush1.bf16.msra.mxu0 %v927
        %948 = vmatprep.subr.bf16.mxu0 0
        %949 = vmatpush1.bf16.msra.mxu0 %v928
        %950 = vmatprep.subr.bf16.mxu0 0
        %951 = vmatpush1.bf16.msra.mxu0 %v929
        %952 = vmatprep.subr.bf16.mxu0 0
        %953 = vmatpush1.bf16.msra.mxu0 %v930
        %954 = vmatprep.subr.bf16.mxu0 0
        %955 = vmatpush1.bf16.msra.mxu0 %v931
        %956 = vmatprep.subr.bf16.mxu0 0
        %957 = vmatpush1.bf16.msra.mxu0 0
        %958 = vmatprep.subr.bf16.mxu0 0
        %959 = vmatpush1.bf16.msra.mxu0 0
        %960 = vmatprep.subr.bf16.mxu0 0
        %961 = vmatpush1.bf16.msra.mxu0 0
        %962 = vmatprep.subr.bf16.mxu0 0
        %963 = vmatpush1.bf16.msra.mxu0 0
        %964 = vmatprep.subr.bf16.mxu0 0
        %965 = vmatpush1.bf16.msra.mxu0 0
        %966 = vmatprep.subr.bf16.mxu0 0
        %967 = vmatpush1.bf16.msra.mxu0 0
        %968 = vmatprep.subr.bf16.mxu0 0
        %969 = vmatpush1.bf16.msra.mxu0 0
        %970 = vmatprep.subr.bf16.mxu0 0
        %971 = vmatpush1.bf16.msra.mxu0 0
        %972 = vmatprep.mubr.bf16.mxu0 0
        %973 = vmatmul.mubr.bf16.gmra.mrb[0].mxu0 %v868
        %v974 = vpop.f32.mrb[0].mxu0
        %v975 = vadd.f32 %v890, %v974
        %v976 = vpop.f32.mrb[0].mxu0
        %v977 = vpop.f32.mrb[0].mxu0
        %v978 = vadd.f32 %v890, %v977
        %v979 = vpop.f32.mrb[0].mxu0
        %980 = vdwg.mxu0
        %981 = vst [vmem:[%s275] sm:$0xff] %v975
        %982 = vst [vmem:[%s275 + $0x8] sm:$0xff] %v978
        %s983 = smul.u32 2, %s20
        %p984 = scmp.lt.s32.totalorder %s983, 3
        %s985 = scalar_select %p984, %s983, 3
        %s986 = smul.addr %s985, 8
        %s987 = scalar_lea.vmem %s5, %s986
        // Predicated region
        $region53: #{classifier_forward.1} parent=39 // pred_check
          %p988 = pneg %p148
        $region54: #{classifier_forward.1} parent=39 // pred_check_branch
          %990 = sbr.rel (%p988) target = $region56
        $region55: #{classifier_forward.1} parent=39 // pred_region
          %s991 = smul.u32 2, %s20
        $region56: #{classifier_forward.1} parent=39 // pred_fallthru
          _
      $region40: #{classifier_forward.1} parent=5 // pred_fallthru
        _
      %p992 = scmp.le.s32.totalorder 2, %s15
      // Predicated region
      $region57: #{classifier_forward.1} parent=5 // pred_check
        %p993 = pneg %p992
      $region58: #{classifier_forward.1} parent=5 // pred_check_branch
        %995 = sbr.rel (%p993) target = $region60
      $region59: #{classifier_forward.1} parent=5 // pred_region
        %s996 = ssub.s32 %s15, 2
        // Predicated region
        $region61: #{classifier_forward.1} parent=59 // pred_check
          %p997 = pneg %p154
        $region62: #{classifier_forward.1} parent=59 // pred_check_branch
          %999 = sbr.rel (%p997) target = $region64
        $region63: #{classifier_forward.1} parent=59 // pred_region
          %s1000 = smul.u32 2, %s21
          %p1001 = scmp.lt.s32.totalorder %s1000, 3
          %s1002 = scalar_select %p1001, %s1000, 3
          %s1003 = smul.addr %s1002, 8
          %s1004 = scalar_lea.vmem %s5, %s1003
        $region64: #{classifier_forward.1} parent=59 // pred_fallthru
          _
      $region60: #{classifier_forward.1} parent=5 // pred_fallthru
        _
    $region6: #{classifier_forward.1} parent=1 // loop_footer
      %s19 = sadd.s32 1, %s15
    $region7: #{classifier_forward.1} parent=1 // loop_footer_branch
      %14 = sbr.rel target = $region3
    $region8: #{classifier_forward.1} parent=1 // loop_exit
      _
    %1005 = vsyncpa [#allocation3], 1
    %s1006 = scalar_lea.sflag [#allocation3], 1
    %1007 = vsyncpa %s1006, 1
    %1008 = vsyncpa [#allocation5], 1

</llo_original>
